<compile_context>
chip_gen: v7x
topology: tpu7x:2x2x1
jax: 0.10.0
libtpu: 0.0.40
codegen_flags: <defaults>
</compile_context>

<pallas_src>
import math

import jax
import jax.numpy as jnp
import numpy as np
from jax.experimental import pallas as pl
from jax.experimental.pallas import tpu as pltpu

D_IN = 150        # input_shape=(150,)
N_HIDDEN = 20     # n_hidden
N_GAUSS = 5       # n_gaussians
H_PAD = 128       # lane-dense hidden width (zero-padded, numerically exact)
HEAD_PAD = 16     # packed head lanes: [0:5]=weight, [5:10]=sigma, [10:15]=mu


def _round_up(x, m):
    return (x + m - 1) // m * m


# ----------------------------------------------------------------------------
# Fused kernel: one batch tile per grid step.  Trunk + fused head matmul +
# masked softmax / exp epilogues, one lane-packed (TB, 16) store.
# ----------------------------------------------------------------------------
def mdn_kernel(x_ref, wh_ref, bh_ref, wq_ref, bq_ref, out_ref):
    x = x_ref[...]                                               # (TB, 150)

    # z_h = tanh(x @ Wh + bh); hidden zero-padded to 128 lanes (padded -> 0).
    zh = jnp.tanh(
        jnp.dot(x, wh_ref[...], preferred_element_type=jnp.float32)
        + bh_ref[...])                                           # (TB, 128)

    # Single fused head matmul (weight | sigma | mu packed along lanes).
    head = (jnp.dot(zh, wq_ref[...], preferred_element_type=jnp.float32)
            + bq_ref[...])                                       # (TB, 16)

    lane = jax.lax.broadcasted_iota(jnp.int32, head.shape, 1)

    # Softmax over the 5 weight lanes only (masked, numerically stable).
    w_logits = jnp.where(lane < N_GAUSS, head, -jnp.inf)
    w_max = jnp.max(w_logits, axis=-1, keepdims=True)
    w_exp = jnp.exp(w_logits - w_max)                            # padded lanes -> 0
    w_soft = w_exp / jnp.sum(w_exp, axis=-1, keepdims=True)      # exact division

    sig = jnp.exp(head)                                          # valid on lanes 5-9

    # lanes 0-4: softmax(weight);  5-9: exp(sigma);  10-14: mu;  15: pad (=0).
    out_ref[...] = jnp.where(lane < N_GAUSS, w_soft,
                             jnp.where(lane < 2 * N_GAUSS, sig, head))


# ----------------------------------------------------------------------------
# Wrapper
# ----------------------------------------------------------------------------
def mdn_forward(x, packed, *, batch_tile=1024):
    B, D = x.shape
    assert D == D_IN

    # Big tiles to amortize per-step overhead, but keep >= 2 grid steps when
    # B allows so both v7x TensorCores (megacore, "parallel" axis) get work.
    TB = max(8, min(batch_tile, _round_up(pl.cdiv(B, 2), 8)))
    Bp = _round_up(B, TB)
    if Bp != B:
        x = jnp.pad(x, ((0, Bp - B), (0, 0)))
    grid = (Bp // TB,)

    def resident(a):   # grid-invariant weight block: constant index_map,
        return pl.BlockSpec(a.shape, lambda i: (0,) * a.ndim)   # fetched once

    w_args = (packed["wh"], packed["bh"], packed["wq"], packed["bq"])

    out = pl.pallas_call(
        mdn_kernel,
        grid=grid,
        in_specs=[pl.BlockSpec((TB, D_IN), lambda i: (i, 0))]
                 + [resident(a) for a in w_args],
        out_specs=pl.BlockSpec((TB, HEAD_PAD), lambda i: (i, 0)),
        out_shape=jax.ShapeDtypeStruct((Bp, HEAD_PAD), jnp.float32),
        compiler_params=pltpu.CompilerParams(
            dimension_semantics=("parallel",),
            vmem_limit_bytes=16 * 1024 * 1024),
    )(x, *w_args)

    weight = out[:B, 0:N_GAUSS]
    sigma = out[:B, N_GAUSS:2 * N_GAUSS]
    mu = out[:B, 2 * N_GAUSS:3 * N_GAUSS]
    return weight, sigma, mu


# ----------------------------------------------------------------------------
# Parameters (deterministic synthetic init, PyTorch nn.Linear-style ranges).
# Weights are stored as (in, out) so the kernel computes x @ W + b.
# ----------------------------------------------------------------------------
def init_params(key):
    ks = jax.random.split(key, 8)

    def lin(kw, kb, din, dout):
        bound = 1.0 / math.sqrt(din)
        w = jax.random.uniform(kw, (din, dout), jnp.float32, -bound, bound)
        b = jax.random.uniform(kb, (1, dout), jnp.float32, -bound, bound)
        return w, b

    wh, bh = lin(ks[0], ks[1], D_IN, N_HIDDEN)
    ww, bw = lin(ks[2], ks[3], N_HIDDEN, N_GAUSS)
    ws, bs = lin(ks[4], ks[5], N_HIDDEN, N_GAUSS)
    wm, bm = lin(ks[6], ks[7], N_HIDDEN, N_GAUSS)

    raw = dict(wh=wh, bh=bh, ww=ww, bw=bw, ws=ws, bs=bs, wm=wm, bm=bm)

    hp = H_PAD - N_HIDDEN
    cp = HEAD_PAD - 3 * N_GAUSS

    # Fused head: lanes [0:5]=weight, [5:10]=sigma, [10:15]=mu, lane 15 = 0.
    wq = jnp.pad(jnp.concatenate([ww, ws, wm], axis=1), ((0, hp), (0, cp)))
    bq = jnp.pad(jnp.concatenate([bw, bs, bm], axis=1), ((0, 0), (0, cp)))

    packed = dict(
        wh=jnp.pad(wh, ((0, 0), (0, hp))),   # (150, 128)
        bh=jnp.pad(bh, ((0, 0), (0, hp))),   # (1, 128)
        wq=wq,                               # (128, 16), padded rows/col = 0
        bq=bq)                               # (1, 16)
    return raw, packed


def mdn_reference(x, raw):
    """Pure-JAX reference mirroring the PyTorch forward."""
    zh = jnp.tanh(x @ raw["wh"] + raw["bh"])
    weight = jax.nn.softmax(zh @ raw["ww"] + raw["bw"], axis=-1)
    sigma = jnp.exp(zh @ raw["ws"] + raw["bs"])
    mu = zh @ raw["wm"] + raw["bm"]
    return weight, sigma, mu


# ----------------------------------------------------------------------------
if __name__ == "__main__":
    raw_params, packed_params = init_params(jax.random.PRNGKey(42))

    def check(B, key):
        x = jax.random.normal(key, (B, D_IN), jnp.float32)
        weight, sigma, mu = mdn_forward(x, packed_params)
        jax.block_until_ready((weight, sigma, mu))
        assert weight.shape == (B, N_GAUSS)
        assert sigma.shape == (B, N_GAUSS)
        assert mu.shape == (B, N_GAUSS)
        ref_w, ref_s, ref_m = mdn_reference(x, raw_params)
        np.testing.assert_allclose(np.asarray(weight), np.asarray(ref_w),
                                   rtol=1e-5, atol=1e-5)
        np.testing.assert_allclose(np.asarray(sigma), np.asarray(ref_s),
                                   rtol=1e-5, atol=1e-5)
        np.testing.assert_allclose(np.asarray(mu), np.asarray(ref_m),
                                   rtol=1e-5, atol=1e-5)
        assert np.allclose(np.asarray(weight).sum(-1), 1.0, atol=1e-5)

    # Small case (single tile, batch padded 4 -> 8).
    check(4, jax.random.PRNGKey(0))
    # Non-multiple batch exercising the 2-tile / padded path.
    check(1000, jax.random.PRNGKey(1))

    print("KERNEL_OK")
</pallas_src>

<mosaic_0001>
module attributes {stable_mosaic.version = 11 : i64} {
  func.func @mdn_kernel(%arg0: i32, %arg1: memref<8x150xf32, #tpu.memory_space<vmem>>, %arg2: memref<150x128xf32, #tpu.memory_space<vmem>>, %arg3: memref<1x128xf32, #tpu.memory_space<vmem>>, %arg4: memref<128x16xf32, #tpu.memory_space<vmem>>, %arg5: memref<1x16xf32, #tpu.memory_space<vmem>>, %arg6: memref<8x16xf32, #tpu.memory_space<vmem>>) attributes {dimension_semantics = [#tpu.dimension_semantics<parallel>], iteration_bounds = array<i64: 1>, scalar_prefetch = 0 : i64, scratch_operands = 0 : i64, tpu.core_type = #tpu.core_type<tc>, window_params = [{transform_indices = @transform_0, window_bounds = array<i64: 8, 150>}, {pipeline_mode = #tpu.pipeline_mode<synchronous>, transform_indices = @transform_1, window_bounds = array<i64: 150, 128>}, {pipeline_mode = #tpu.pipeline_mode<synchronous>, transform_indices = @transform_2, window_bounds = array<i64: 1, 128>}, {pipeline_mode = #tpu.pipeline_mode<synchronous>, transform_indices = @transform_3, window_bounds = array<i64: 128, 16>}, {pipeline_mode = #tpu.pipeline_mode<synchronous>, transform_indices = @transform_4, window_bounds = array<i64: 1, 16>}, {transform_indices = @transform_5, window_bounds = array<i64: 8, 16>}]} {
    %c0 = arith.constant 0 : index
    %c0_0 = arith.constant 0 : index
    %0 = vector.load %arg1[%c0, %c0_0] : memref<8x150xf32, #tpu.memory_space<vmem>>, vector<8x150xf32>
    %c0_1 = arith.constant 0 : index
    %c0_2 = arith.constant 0 : index
    %1 = vector.load %arg2[%c0_1, %c0_2] : memref<150x128xf32, #tpu.memory_space<vmem>>, vector<150x128xf32>
    %cst = arith.constant dense<0.000000e+00> : vector<8x128xf32>
    %2 = tpu.matmul %0, %1, %cst {dimension_numbers = #tpu.dot_dimension_numbers<[1], [0], [0], [1], [0, 0, 1, 1], [], []>} : vector<8x150xf32>, vector<150x128xf32>, vector<8x128xf32> -> vector<8x128xf32>
    %c0_3 = arith.constant 0 : index
    %c0_4 = arith.constant 0 : index
    %3 = vector.load %arg3[%c0_3, %c0_4] : memref<1x128xf32, #tpu.memory_space<vmem>>, vector<1x128xf32>
    %4 = vector.broadcast %3 : vector<1x128xf32> to vector<8x128xf32>
    %5 = arith.addf %2, %4 : vector<8x128xf32>
    %6 = math.tanh %5 : vector<8x128xf32>
    %c0_5 = arith.constant 0 : index
    %c0_6 = arith.constant 0 : index
    %7 = vector.load %arg4[%c0_5, %c0_6] : memref<128x16xf32, #tpu.memory_space<vmem>>, vector<128x16xf32>
    %cst_7 = arith.constant dense<0.000000e+00> : vector<8x16xf32>
    %8 = tpu.matmul %6, %7, %cst_7 {dimension_numbers = #tpu.dot_dimension_numbers<[1], [0], [0], [1], [0, 0, 1, 1], [], []>} : vector<8x128xf32>, vector<128x16xf32>, vector<8x16xf32> -> vector<8x16xf32>
    %c0_8 = arith.constant 0 : index
    %c0_9 = arith.constant 0 : index
    %9 = vector.load %arg5[%c0_8, %c0_9] : memref<1x16xf32, #tpu.memory_space<vmem>>, vector<1x16xf32>
    %10 = vector.broadcast %9 : vector<1x16xf32> to vector<8x16xf32>
    %11 = arith.addf %8, %10 : vector<8x16xf32>
    %12 = tpu.iota {dimensions = array<i32: 1>} : vector<8x16xi32>
    %c5_i32 = arith.constant 5 : i32
    %13 = vector.broadcast %c5_i32 : i32 to vector<8x16xi32>
    %14 = arith.cmpi slt, %12, %13 : vector<8x16xi32>
    %cst_10 = arith.constant 0xFF800000 : f32
    %15 = vector.broadcast %cst_10 : f32 to vector<8x16xf32>
    %16 = arith.select %14, %11, %15 : vector<8x16xi1>, vector<8x16xf32>
    %cst_11 = arith.constant dense<0xFF800000> : vector<8xf32>
    %17 = vector.multi_reduction <maximumf>, %16, %cst_11 [1] : vector<8x16xf32> to vector<8xf32>
    %18 = vector.shape_cast %17 : vector<8xf32> to vector<8x1xf32>
    %19 = vector.broadcast %18 : vector<8x1xf32> to vector<8x16xf32>
    %20 = arith.subf %16, %19 : vector<8x16xf32>
    %21 = math.exp %20 : vector<8x16xf32>
    %cst_12 = arith.constant dense<0.000000e+00> : vector<8xf32>
    %22 = vector.multi_reduction <add>, %21, %cst_12 [1] : vector<8x16xf32> to vector<8xf32>
    %23 = vector.shape_cast %22 : vector<8xf32> to vector<8x1xf32>
    %24 = vector.broadcast %23 : vector<8x1xf32> to vector<8x16xf32>
    %25 = arith.divf %21, %24 : vector<8x16xf32>
    %26 = math.exp %11 : vector<8x16xf32>
    %c5_i32_13 = arith.constant 5 : i32
    %27 = vector.broadcast %c5_i32_13 : i32 to vector<8x16xi32>
    %28 = arith.cmpi slt, %12, %27 : vector<8x16xi32>
    %c10_i32 = arith.constant 10 : i32
    %29 = vector.broadcast %c10_i32 : i32 to vector<8x16xi32>
    %30 = arith.cmpi slt, %12, %29 : vector<8x16xi32>
    %31 = arith.select %30, %26, %11 : vector<8x16xi1>, vector<8x16xf32>
    %32 = arith.select %28, %25, %31 : vector<8x16xi1>, vector<8x16xf32>
    %c0_14 = arith.constant 0 : index
    %c0_15 = arith.constant 0 : index
    %33 = vector.load %arg6[%c0_14, %c0_15] : memref<8x16xf32, #tpu.memory_space<vmem>>, vector<8x16xf32>
    tpu.vector_store %arg6[%c0_14, %c0_15], %32 {strides = array<i32>} : memref<8x16xf32, #tpu.memory_space<vmem>>, vector<8x16xf32>,
    return
  }
  func.func @transform_0(%arg0: i32) -> (i32, i32) {
    %c0_i32 = arith.constant 0 : i32
    %c0_i32_0 = arith.constant 0 : i32
    return %arg0, %c0_i32 : i32, i32
  }
  func.func @transform_1(%arg0: i32) -> (i32, i32) {
    %c0_i32 = arith.constant 0 : i32
    %c0_i32_0 = arith.constant 0 : i32
    %c0_i32_1 = arith.constant 0 : i32
    return %c0_i32, %c0_i32_0 : i32, i32
  }
  func.func @transform_2(%arg0: i32) -> (i32, i32) {
    %c0_i32 = arith.constant 0 : i32
    %c0_i32_0 = arith.constant 0 : i32
    %c0_i32_1 = arith.constant 0 : i32
    return %c0_i32, %c0_i32_0 : i32, i32
  }
  func.func @transform_3(%arg0: i32) -> (i32, i32) {
    %c0_i32 = arith.constant 0 : i32
    %c0_i32_0 = arith.constant 0 : i32
    %c0_i32_1 = arith.constant 0 : i32
    return %c0_i32, %c0_i32_0 : i32, i32
  }
  func.func @transform_4(%arg0: i32) -> (i32, i32) {
    %c0_i32 = arith.constant 0 : i32
    %c0_i32_0 = arith.constant 0 : i32
    %c0_i32_1 = arith.constant 0 : i32
    return %c0_i32, %c0_i32_0 : i32, i32
  }
  func.func @transform_5(%arg0: i32) -> (i32, i32) {
    %c0_i32 = arith.constant 0 : i32
    %c0_i32_0 = arith.constant 0 : i32
    return %arg0, %c0_i32 : i32, i32
  }
}

</mosaic_0001>

<llo_original>
// kernel: tpu_custom_call.1
$region0: #{tpu_custom_call.1}
  #allocation0 [shape = 'u32[]', space=smem, size = 0x4, offset = 0x4, fixed_abs, tag = 'smem constant byte address 0x4 - core index']
  #allocation1 [shape = 'u32[144,128]{1,0:T(1,128)}', space=vmem, size = 0x12000, scoped, tag = 'internal scratch']
  %s0 = inlined_call_operand.vmem [shape: f32[8,150], index: 0, kind: input, shape index: {}]
  %s1 = inlined_call_operand.hbm [shape: f32[150,128], index: 1, kind: input, shape index: {}]
  %s2 = inlined_call_operand.vmem [shape: f32[1,128], index: 2, kind: input, shape index: {}]
  %s3 = inlined_call_operand.vmem [shape: f32[128,16], index: 3, kind: input, shape index: {}]
  %s4 = inlined_call_operand.vmem [shape: f32[1,16], index: 4, kind: input, shape index: {}]
  %s5 = inlined_call_operand.hbm [shape: f32[8,16], index: 5, kind: output, shape index: {}]
  %s6 = sld [smem:[#allocation0]]
  $region34: #{tpu_custom_call.1} parent=0
    _
  %s8 = ssub.s32 1, %s6
  %s9 = scalar_select 0, %s8, %s6
  $region1: #{tpu_custom_call.1} parent=0
    #allocation2 [shape = 'u8[77824]{0}', space=vmem, size = 0x13000, scoped, tag = 'input window, operand 1, single buffered']
    #allocation3 [shape = 's32[1]{0}', space=sflag, size = 0x4, scoped, tag = 'scoped memory for tpu_custom_call.1']
    #allocation4 [shape = 's32[1]{0}', space=sflag, size = 0x4, scoped, tag = 'scoped memory for tpu_custom_call.1']
    #allocation5 [shape = 'u8[4096]{0}', space=vmem, size = 0x1000, scoped, tag = 'output window, operand 0, single buffered']
    %10 = vsyncpa [#allocation3], 0
    %11 = vsyncpa [#allocation4], 0
    // Predicated region
    $region2: #{tpu_custom_call.1} parent=1 // pred_check
      _
    $region3: #{tpu_custom_call.1} parent=1 // pred_check_branch
      %13 = sbr.rel (0) target = $region5
    $region4: #{tpu_custom_call.1} parent=1 // pred_region
      _
    $region5: #{tpu_custom_call.1} parent=1 // pred_fallthru
      _
    // Predicated region
    $region6: #{tpu_custom_call.1} parent=1 // pred_check
      _
    $region7: #{tpu_custom_call.1} parent=1 // pred_check_branch
      %15 = sbr.rel (0) target = $region9
    $region8: #{tpu_custom_call.1} parent=1 // pred_region
      %s17 = ssub.s32 2432, 2432
      %18 = vsyncadd [#allocation3], %s17
      %s19 = sshll.u32 [#allocation2], 4
      %s20 = int_to_ptr.vmem [resolvable:$true] %s19
      %25 = dma.hbm_to_vmem [thread:$0]  %s1, 2432, %s20, [#allocation3], 128, 128, 8
    $region9: #{tpu_custom_call.1} parent=1 // pred_fallthru
      _
    // Predicated region
    $region10: #{tpu_custom_call.1} parent=1 // pred_check
      _
    $region11: #{tpu_custom_call.1} parent=1 // pred_check_branch
      %27 = sbr.rel (0) target = $region13
    $region12: #{tpu_custom_call.1} parent=1 // pred_region
      _
    $region13: #{tpu_custom_call.1} parent=1 // pred_fallthru
      _
    // Predicated region
    $region14: #{tpu_custom_call.1} parent=1 // pred_check
      _
    $region15: #{tpu_custom_call.1} parent=1 // pred_check_branch
      %29 = sbr.rel (0) target = $region17
    $region16: #{tpu_custom_call.1} parent=1 // pred_region
      _
    $region17: #{tpu_custom_call.1} parent=1 // pred_fallthru
      _
    // Predicated region
    $region18: #{tpu_custom_call.1} parent=1 // pred_check
      _
    $region19: #{tpu_custom_call.1} parent=1 // pred_check_branch
      %31 = sbr.rel (0) target = $region21
    $region20: #{tpu_custom_call.1} parent=1 // pred_region
      _
    $region21: #{tpu_custom_call.1} parent=1 // pred_fallthru
      _
    // Predicated region
    $region22: #{tpu_custom_call.1} parent=1 // pred_check
      _
    $region23: #{tpu_custom_call.1} parent=1 // pred_check_branch
      %33 = sbr.rel (0) target = $region25
    $region24: #{tpu_custom_call.1} parent=1 // pred_region
      %34 = dma.done [#allocation3], 2432
    $region25: #{tpu_custom_call.1} parent=1 // pred_fallthru
      _
    %v35 = vld [vmem:[%s0] sm:$0xff]
    %v36 = vld [vmem:[%s0 + $0x8] sm:$0xff]
    %v37 = vld [vmem:[#allocation2] sm:$0xff]
    %v38 = vld [vmem:[#allocation2 + $0x8] sm:$0xff]
    %v39 = vld [vmem:[#allocation2 + $0x10] sm:$0xff]
    %v40 = vld [vmem:[#allocation2 + $0x18] sm:$0xff]
    %v41 = vld [vmem:[#allocation2 + $0x20] sm:$0xff]
    %v42 = vld [vmem:[#allocation2 + $0x28] sm:$0xff]
    %v43 = vld [vmem:[#allocation2 + $0x30] sm:$0xff]
    %v44 = vld [vmem:[#allocation2 + $0x38] sm:$0xff]
    %v45 = vld [vmem:[#allocation2 + $0x40] sm:$0xff]
    %v46 = vld [vmem:[#allocation2 + $0x48] sm:$0xff]
    %v47 = vld [vmem:[#allocation2 + $0x50] sm:$0xff]
    %v48 = vld [vmem:[#allocation2 + $0x58] sm:$0xff]
    %v49 = vld [vmem:[#allocation2 + $0x60] sm:$0xff]
    %v50 = vld [vmem:[#allocation2 + $0x68] sm:$0xff]
    %v51 = vld [vmem:[#allocation2 + $0x70] sm:$0xff]
    %v52 = vld [vmem:[#allocation2 + $0x78] sm:$0xff]
    %v53 = vld [vmem:[#allocation2 + $0x80] sm:$0xff]
    %v54 = vld [vmem:[#allocation2 + $0x88] sm:$0xff]
    %v55 = vld [vmem:[#allocation2 + $0x90] sm:$0x3f]
    %v56 = vld [vmem:[%s2] sm:$0x1]
    %v58 = vlaneseq
    %v59 = vshrl.u32 %v58, 7
    %v60 = vsub.s32 0, %v59
    %v61 = vrot.slane %v56, %v60
    %vm63 = vcmask 179200
    %v65 = vsel %vm63, %v36, 0
    %vm67 = vcmask 1045504
    %v69 = vsel %vm67, %v55, 0
    %71 = vmatprep.subr.mxu0 0.0
    %72 = vmatpush1.msra.mxu0 %v37
    %73 = vmatprep.subr.mxu0 0.0
    %74 = vmatpush1.msra.mxu0 %v38
    %75 = vmatprep.subr.mxu0 0.0
    %76 = vmatpush1.msra.mxu0 %v39
    %77 = vmatprep.subr.mxu0 0.0
    %78 = vmatpush1.msra.mxu0 %v40
    %79 = vmatprep.subr.mxu0 0.0
    %80 = vmatpush1.msra.mxu0 %v41
    %81 = vmatprep.subr.mxu0 0.0
    %82 = vmatpush1.msra.mxu0 %v42
    %83 = vmatprep.subr.mxu0 0.0
    %84 = vmatpush1.msra.mxu0 %v43
    %85 = vmatprep.subr.mxu0 0.0
    %86 = vmatpush1.msra.mxu0 %v44
    %87 = vmatprep.subr.mxu0 0.0
    %88 = vmatpush1.msra.mxu0 %v45
    %89 = vmatprep.subr.mxu0 0.0
    %90 = vmatpush1.msra.mxu0 %v46
    %91 = vmatprep.subr.mxu0 0.0
    %92 = vmatpush1.msra.mxu0 %v47
    %93 = vmatprep.subr.mxu0 0.0
    %94 = vmatpush1.msra.mxu0 %v48
    %95 = vmatprep.subr.mxu0 0.0
    %96 = vmatpush1.msra.mxu0 %v49
    %97 = vmatprep.subr.mxu0 0.0
    %98 = vmatpush1.msra.mxu0 %v50
    %99 = vmatprep.subr.mxu0 0.0
    %100 = vmatpush1.msra.mxu0 %v51
    %101 = vmatprep.subr.mxu0 0.0
    %102 = vmatpush1.msra.mxu0 %v52
    %103 = vmatprep.subr.mxu0 0.0
    %104 = vmatpush1.msra.mxu0 %v53
    %105 = vmatprep.subr.mxu0 0.0
    %106 = vmatpush1.msra.mxu0 %v54
    %107 = vmatprep.subr.mxu0 0.0
    %108 = vmatpush1.msra.mxu0 %v69
    %109 = vmatprep.subr.mxu0 0.0
    %110 = vmatpush1.msra.mxu0 0.0
    %111 = vmatprep.subr.mxu0 0.0
    %112 = vmatpush1.msra.mxu0 0.0
    %113 = vmatprep.subr.mxu0 0.0
    %114 = vmatpush1.msra.mxu0 0.0
    %115 = vmatprep.subr.mxu0 0.0
    %116 = vmatpush1.msra.mxu0 0.0
    %117 = vmatprep.subr.mxu0 0.0
    %118 = vmatpush1.msra.mxu0 0.0
    %119 = vmatprep.subr.mxu0 0.0
    %120 = vmatpush1.msra.mxu0 0.0
    %121 = vmatprep.subr.mxu0 0.0
    %122 = vmatpush1.msra.mxu0 0.0
    %123 = vmatprep.subr.mxu0 0.0
    %124 = vmatpush1.msra.mxu0 0.0
    %125 = vmatprep.subr.mxu0 0.0
    %126 = vmatpush1.msra.mxu0 0.0
    %127 = vmatprep.subr.mxu0 0.0
    %128 = vmatpush1.msra.mxu0 0.0
    %129 = vmatprep.subr.mxu0 0.0
    %130 = vmatpush1.msra.mxu0 0.0
    %131 = vmatprep.subr.mxu0 0.0
    %132 = vmatpush1.msra.mxu0 0.0
    %133 = vmatprep.subr.mxu0 0.0
    %134 = vmatpush1.msra.mxu0 0.0
    %135 = vmatprep.mubr.f32.mxu0 %v65
    %136 = vmatmul.mubr.f32.gmra.mrb[0].mxu0 %v35
    %v137 = vpop.f32.mrb[0].mxu0
    %v138 = vadd.f32 %v61, %v137
    %v139 = vpop.f32.mrb[0].mxu0
    %140 = vdwg.mxu0
    %v141 = vtanh.pop %v138
    %v142 = vld [vmem:[%s3] sm:$0xff]
    %v143 = vld [vmem:[%s3 + $0x8] sm:$0xff]
    %v144 = vld [vmem:[%s3 + $0x10] sm:$0xff]
    %v145 = vld [vmem:[%s3 + $0x18] sm:$0xff]
    %v146 = vld [vmem:[%s3 + $0x20] sm:$0xff]
    %v147 = vld [vmem:[%s3 + $0x28] sm:$0xff]
    %v148 = vld [vmem:[%s3 + $0x30] sm:$0xff]
    %v149 = vld [vmem:[%s3 + $0x38] sm:$0xff]
    %v150 = vld [vmem:[%s3 + $0x40] sm:$0xff]
    %v151 = vld [vmem:[%s3 + $0x48] sm:$0xff]
    %v152 = vld [vmem:[%s3 + $0x50] sm:$0xff]
    %v153 = vld [vmem:[%s3 + $0x58] sm:$0xff]
    %v154 = vld [vmem:[%s3 + $0x60] sm:$0xff]
    %v155 = vld [vmem:[%s3 + $0x68] sm:$0xff]
    %v156 = vld [vmem:[%s3 + $0x70] sm:$0xff]
    %v157 = vld [vmem:[%s3 + $0x78] sm:$0xff]
    %v158 = vld [vmem:[%s4] sm:$0x1]
    %v160 = vlaneseq
    %v161 = vshrl.u32 %v160, 7
    %v162 = vsub.s32 0, %v161
    %v163 = vrot.slane %v158, %v162
    %165 = vmatprep.subr.mxu0 0.0
    %166 = vmatpush1.msra.mxu0 %v142
    %167 = vmatprep.subr.mxu0 0.0
    %168 = vmatpush1.msra.mxu0 %v143
    %169 = vmatprep.subr.mxu0 0.0
    %170 = vmatpush1.msra.mxu0 %v144
    %171 = vmatprep.subr.mxu0 0.0
    %172 = vmatpush1.msra.mxu0 %v145
    %173 = vmatprep.subr.mxu0 0.0
    %174 = vmatpush1.msra.mxu0 %v146
    %175 = vmatprep.subr.mxu0 0.0
    %176 = vmatpush1.msra.mxu0 %v147
    %177 = vmatprep.subr.mxu0 0.0
    %178 = vmatpush1.msra.mxu0 %v148
    %179 = vmatprep.subr.mxu0 0.0
    %180 = vmatpush1.msra.mxu0 %v149
    %181 = vmatprep.subr.mxu0 0.0
    %182 = vmatpush1.msra.mxu0 %v150
    %183 = vmatprep.subr.mxu0 0.0
    %184 = vmatpush1.msra.mxu0 %v151
    %185 = vmatprep.subr.mxu0 0.0
    %186 = vmatpush1.msra.mxu0 %v152
    %187 = vmatprep.subr.mxu0 0.0
    %188 = vmatpush1.msra.mxu0 %v153
    %189 = vmatprep.subr.mxu0 0.0
    %190 = vmatpush1.msra.mxu0 %v154
    %191 = vmatprep.subr.mxu0 0.0
    %192 = vmatpush1.msra.mxu0 %v155
    %193 = vmatprep.subr.mxu0 0.0
    %194 = vmatpush1.msra.mxu0 %v156
    %195 = vmatprep.subr.mxu0 0.0
    %196 = vmatpush1.msra.mxu0 %v157
    %197 = vmatprep.subr.mxu0 0.0
    %198 = vmatpush1.msra.mxu0 0.0
    %199 = vmatprep.subr.mxu0 0.0
    %200 = vmatpush1.msra.mxu0 0.0
    %201 = vmatprep.subr.mxu0 0.0
    %202 = vmatpush1.msra.mxu0 0.0
    %203 = vmatprep.subr.mxu0 0.0
    %204 = vmatpush1.msra.mxu0 0.0
    %205 = vmatprep.subr.mxu0 0.0
    %206 = vmatpush1.msra.mxu0 0.0
    %207 = vmatprep.subr.mxu0 0.0
    %208 = vmatpush1.msra.mxu0 0.0
    %209 = vmatprep.subr.mxu0 0.0
    %210 = vmatpush1.msra.mxu0 0.0
    %211 = vmatprep.subr.mxu0 0.0
    %212 = vmatpush1.msra.mxu0 0.0
    %213 = vmatprep.subr.mxu0 0.0
    %214 = vmatpush1.msra.mxu0 0.0
    %215 = vmatprep.subr.mxu0 0.0
    %216 = vmatpush1.msra.mxu0 0.0
    %217 = vmatprep.subr.mxu0 0.0
    %218 = vmatpush1.msra.mxu0 0.0
    %219 = vmatprep.subr.mxu0 0.0
    %220 = vmatpush1.msra.mxu0 0.0
    %221 = vmatprep.subr.mxu0 0.0
    %222 = vmatpush1.msra.mxu0 0.0
    %223 = vmatprep.subr.mxu0 0.0
    %224 = vmatpush1.msra.mxu0 0.0
    %225 = vmatprep.subr.mxu0 0.0
    %226 = vmatpush1.msra.mxu0 0.0
    %227 = vmatprep.subr.mxu0 0.0
    %228 = vmatpush1.msra.mxu0 0.0
    %229 = vmatprep.mubr.f32.mxu0 0.0
    %230 = vmatmul.mubr.f32.gmra.mrb[0].mxu0 %v141
    %v231 = vpop.f32.mrb[0].mxu0
    %v232 = vadd.f32 %v163, %v231
    %v233 = vpop.f32.mrb[0].mxu0
    %234 = vdwg.mxu0
    %v235 = vlaneseq
    %v236 = vand.u32 %v235, 127
    %vm237 = vcmp.lt.s32.totalorder %v236, 5
    %v238 = vsel %vm237, %v232, -inf
    %vm239 = vcmask 130048
    %v240 = vsel %vm239, %v238, -inf
    %241 = vmax.xlane.f32.xlu0 %v240
    %v242 = vpop.xlane.xlu0 %241
    %v243 = vsub.f32 %v238, %v242
    %v244 = vmul.f32 %v243, 1.442695
    %v245 = vpow.pop %v244
    %v246 = vsel %vm239, %v245, 0.0
    %247 = vadd.xlane.f32.xlu0 %v246
    %v248 = vpop.xlane.xlu0 %247
    %v249 = vrcp.pop %v248
    %v250 = vmul.f32 %v245, %v249
    %v251 = vmul.f32 %v232, 1.442695
    %v252 = vpow.pop %v251
    %vm253 = vcmp.lt.s32.totalorder %v236, 10
    %v254 = vsel %vm253, %v252, %v232
    %v255 = vsel %vm237, %v250, %v254
    %256 = vst.msk [vmem:[#allocation5] sm:$0xff] %vm239, %v255
    // Predicated region
    $region26: #{tpu_custom_call.1} parent=1 // pred_check
      _
    $region27: #{tpu_custom_call.1} parent=1 // pred_check_branch
      %258 = sbr.rel (0) target = $region29
    $region28: #{tpu_custom_call.1} parent=1 // pred_region
      %s260 = ssub.s32 128, 128
      %261 = vsyncadd [#allocation4], %s260
      %s263 = sshll.u32 [#allocation5], 4
      %s264 = int_to_ptr.vmem [resolvable:$true] %s263
      %266 = dma.vmem_to_hbm [thread:$0]  %s264, 128, %s5, [#allocation4]
    $region29: #{tpu_custom_call.1} parent=1 // pred_fallthru
      _
    // Predicated region
    $region30: #{tpu_custom_call.1} parent=1 // pred_check
      _
    $region31: #{tpu_custom_call.1} parent=1 // pred_check_branch
      %268 = sbr.rel (0) target = $region33
    $region32: #{tpu_custom_call.1} parent=1 // pred_region
      %269 = dma.done [#allocation4], 128
    $region33: #{tpu_custom_call.1} parent=1 // pred_fallthru
      _
    %270 = vsyncpa [#allocation3], 1
    %271 = vsyncpa [#allocation4], 1

</llo_original>
